<compile_context>
chip_gen: v5e
topology: v5e:2x2
jax: 0.10.0
libtpu: 0.0.40
codegen_flags: <defaults>
</compile_context>

<pallas_src>
import functools

import jax
import jax.numpy as jnp
from jax.experimental import pallas as pl
from jax.experimental.pallas import tpu as pltpu

LN_EPS = 1e-5  # torch.nn.LayerNorm default


# --------------------------------------------------------------------------- kernel
def _cross_attn_kernel(x_ref, g_ref, b_ref, wkv_ref, wq_ref, wo_ref, bo_ref,
                       selk_ref, selv_ref, o_ref, *, heads):
    """One grid step: TB batch elements of single-query multi-head cross attention."""
    tb, n, d = x_ref.shape
    two_inner = wkv_ref.shape[1]
    rows = tb * n

    gamma = g_ref[...].astype(jnp.float32)            # (1, D)
    beta = b_ref[...].astype(jnp.float32)             # (1, D)

    # ---- pre-LayerNorm of the whole (tb, n, d) tile, statistics in f32 ----
    x = x_ref[...].astype(jnp.float32)                # (TB, N, D)
    mu = jnp.mean(x, axis=-1, keepdims=True)
    var = jnp.mean(jnp.square(x - mu), axis=-1, keepdims=True)
    xn = (x - mu) * jax.lax.rsqrt(var + LN_EPS) * gamma + beta   # (TB, N, D)

    # ---- fused [K|V] projection over all rows: one wide, lane-dense MXU matmul ----
    kv = jnp.dot(xn.reshape(rows, d).astype(wkv_ref.dtype), wkv_ref[...],
                 preferred_element_type=jnp.float32)             # (TB*N, 2*inner)
    kv3 = kv.reshape(tb, n, two_inner)

    # ---- Q from the already-normalised token-0 rows (no LN recompute).
    #      Wq is zero-padded to 2*inner output columns (V half = 0) and pre-scaled. ----
    q = jnp.dot(xn[:, 0, :].astype(wq_ref.dtype), wq_ref[...],
                preferred_element_type=jnp.float32)              # (TB, 2*inner)

    # ---- per-head attention scores, staying at full 2*inner lane width ----
    qb = jax.lax.broadcast_in_dim(q, (tb, n, two_inner), (0, 2))
    p = kv3 * qb                                                 # V half is zero (q padding)
    dots = jnp.dot(p.reshape(rows, two_inner), selk_ref[...],
                   preferred_element_type=jnp.float32)           # (TB*N, H)
    dots = dots.reshape(tb, n, heads)

    # ---- softmax over the key axis (axis=1) ----
    mx = jnp.max(dots, axis=1, keepdims=True)                    # (TB, 1, H)
    e = jnp.exp(dots - mx)
    s = jnp.sum(e, axis=1, keepdims=True)
    attn = e * pl.reciprocal(s, approx=True)                     # (TB, N, H)

    # ---- attention-weighted V, again at full 2*inner lane width ----
    a = jnp.dot(attn.reshape(rows, heads), selv_ref[...],
                preferred_element_type=jnp.float32)              # (TB*N, 2*inner), K half = 0
    ctx = jnp.sum(a.reshape(tb, n, two_inner) * kv3, axis=1)     # (TB, 2*inner)

    # ---- output projection (K-half rows of the padded Wo^T are zero) ----
    y = jnp.dot(ctx.astype(wo_ref.dtype), wo_ref[...],
                preferred_element_type=jnp.float32)
    y = y + bo_ref[...].astype(jnp.float32)                      # (TB, D)
    o_ref[...] = y.astype(o_ref.dtype)


# ----------------------------------------------------------------- one-time setup
def make_cross_attention_params(gamma, beta, wk, wv, wq, wo, bo, *, heads,
                                weight_dtype=None):
    """One-time host-side prep (call at model setup, NOT per forward):
    transpose PyTorch-layout weights to (in, out), fuse [Wk|Wv], fold the attention
    scale into Wq, zero-pad Wq / Wo / head selectors to full 2*inner lane width."""
    dim = gamma.shape[0]
    inner = wk.shape[0]
    dim_head = inner // heads
    scale = float(dim_head) ** -0.5
    wd = weight_dtype or wk.dtype

    w_kv = jnp.concatenate([wk.T, wv.T], axis=1).astype(wd)                  # (D, 2*inner)
    w_q = jnp.concatenate([wq.T * scale,
                           jnp.zeros((dim, inner), wq.dtype)], axis=1).astype(wd)  # (D, 2*inner)
    w_o = jnp.concatenate([jnp.zeros((inner, dim), wo.dtype),
                           wo.T], axis=0).astype(wd)                          # (2*inner, D)

    col_head = jnp.arange(inner, dtype=jnp.int32) // dim_head
    sel = (col_head[:, None] == jnp.arange(heads, dtype=jnp.int32)[None, :]).astype(jnp.float32)
    zeros = jnp.zeros_like(sel)
    sel_k = jnp.concatenate([sel, zeros], axis=0)                             # (2*inner, H): K half
    sel_v = jnp.concatenate([zeros, sel], axis=0).T                           # (H, 2*inner): V half

    return dict(
        gamma=gamma.reshape(1, dim), beta=beta.reshape(1, dim),
        w_kv=w_kv, w_q=w_q, w_o=w_o, bo=bo.reshape(1, dim),
        sel_k=sel_k, sel_v=sel_v,
        heads=heads, dim_head=dim_head, dim=dim, inner=inner,
    )


# -------------------------------------------------------------------- tile sizing
def _vmem_limit_bytes():
    """Generation-aware VMEM budget (v7x: 64 MiB, v5e/v6e: 128 MiB physical)."""
    mib = 1024 * 1024
    try:
        cap = int(getattr(pltpu.get_tpu_info(), "vmem_capacity_bytes", 64 * mib))
    except Exception:
        cap = 64 * mib  # conservative (v7x-sized) fallback
    # leave headroom for Mosaic internal scratch; more than ~100 MiB buys nothing here
    return max(32 * mib, min(cap - 24 * mib, 100 * mib))


def _live_bytes_per_batch_elem(n, d, two_inner, heads, in_itemsize):
    """Conservative estimate of live in-kernel bytes per batch element (NOT just
    the input block): f32 intermediates dominate (~10-16x the input block)."""
    f32 = 4
    total = 2 * n * d * in_itemsize            # double-buffered input block
    total += 2 * n * d * f32                   # f32 copy of x + xn
    total += 5 * n * two_inner * f32           # kv, q-broadcast, p, a, a*kv
    total += 3 * n * heads * f32               # dots, e, attn
    total += (4 * two_inner + 4 * d) * f32     # q, ctx, y, out block (double-buffered)
    return total


def _const_bytes(d, two_inner, heads, w_itemsize):
    """Grid-invariant operand footprint (default double-buffered)."""
    f32 = 4
    wb = 3 * d * two_inner * w_itemsize        # w_kv, w_q, w_o
    wb += 2 * two_inner * heads * f32          # selectors
    wb += 4 * d * f32                          # gamma, beta, bo
    return 2 * wb


def _choose_batch_tile(b, tb_max):
    """Return (tb, b_pad). Prefer an 8-aligned divisor of b (no host-side padding)."""
    if b <= tb_max:
        return b, b
    tb_max = max(8, (tb_max // 8) * 8)
    for t in range(tb_max, 7, -8):
        if b % t == 0:
            return t, b
    return tb_max, pl.cdiv(b, tb_max) * tb_max


# ----------------------------------------------------------------------- wrapper
def cross_attention_pallas(x, params, *, batch_tile=None, vmem_limit_bytes=None):
    """x: (B, N, D). Returns (B, 1, D), matching CrossAttention.forward(x)."""
    b, n, d = x.shape
    heads, inner = params["heads"], params["inner"]
    two_inner = 2 * inner
    assert d == params["dim"]

    vmem_limit = int(vmem_limit_bytes or _vmem_limit_bytes())

    if batch_tile is None:
        live = _live_bytes_per_batch_elem(n, d, two_inner, heads, x.dtype.itemsize)
        avail = vmem_limit - _const_bytes(d, two_inner, heads,
                                          params["w_kv"].dtype.itemsize)
        avail = max(avail, vmem_limit // 4)
        # ~0.5x of the remaining budget for per-element live bytes; cap for sanity
        batch_tile = max(8, min(int((avail // 2) // max(live, 1)), 1024))

    tb, b_pad = _choose_batch_tile(b, int(batch_tile))

    x_in = x
    if b_pad != b:
        # Rare fallback only (no 8-aligned divisor of b fits the tile budget).
        x_in = jnp.concatenate([x, jnp.zeros((b_pad - b, n, d), x.dtype)], axis=0)

    grid = (b_pad // tb,)
    kernel = functools.partial(_cross_attn_kernel, heads=heads)

    def const_spec(shape):
        return pl.BlockSpec(shape, lambda i, _s=len(shape): (0,) * _s)

    out2d = pl.pallas_call(
        kernel,
        out_shape=jax.ShapeDtypeStruct((b_pad, d), x.dtype),
        grid_spec=pltpu.PrefetchScalarGridSpec(
            num_scalar_prefetch=0,
            grid=grid,
            in_specs=[
                pl.BlockSpec((tb, n, d), lambda i: (i, 0, 0)),   # x batch tile
                const_spec((1, d)),                              # LN gamma
                const_spec((1, d)),                              # LN beta
                const_spec((d, two_inner)),                      # [Wk^T | Wv^T]
                const_spec((d, two_inner)),                      # [Wq^T*scale | 0]
                const_spec((two_inner, d)),                      # [0 ; Wo^T]
                const_spec((1, d)),                              # bo
                const_spec((two_inner, heads)),                  # K-half head selector
                const_spec((heads, two_inner)),                  # V-half head selector^T
            ],
            out_specs=pl.BlockSpec((tb, d), lambda i: (i, 0)),   # lane-dense (TB, D) slab
        ),
        compiler_params=pltpu.CompilerParams(
            dimension_semantics=("parallel",),   # batch tiles independent (megacore / v7x 2-TC)
            vmem_limit_bytes=vmem_limit,
        ),
    )(x_in, params["gamma"], params["beta"], params["w_kv"], params["w_q"],
      params["w_o"], params["bo"], params["sel_k"], params["sel_v"])

    if b_pad != b:
        out2d = out2d[:b]
    return out2d.reshape(b, 1, d)


# --------------------------------------------------------------------- reference
def cross_attention_ref(x, gamma, beta, wk, wv, wq, wo, bo, *, heads):
    """Pure-JAX reference matching the PyTorch forward."""
    b, n, d = x.shape
    inner = wk.shape[0]
    dh = inner // heads
    scale = float(dh) ** -0.5
    mean = jnp.mean(x, axis=-1, keepdims=True)
    var = jnp.mean((x - mean) ** 2, axis=-1, keepdims=True)
    xn = (x - mean) / jnp.sqrt(var + LN_EPS) * gamma + beta
    k = xn @ wk.T
    v = xn @ wv.T
    q = xn[:, 0:1, :] @ wq.T
    k = k.reshape(b, n, heads, dh).transpose(0, 2, 1, 3)
    v = v.reshape(b, n, heads, dh).transpose(0, 2, 1, 3)
    q = q.reshape(b, 1, heads, dh).transpose(0, 2, 1, 3)
    dots = jnp.einsum('bhid,bhjd->bhij', q, k) * scale
    attn = jax.nn.softmax(dots, axis=-1)
    out = jnp.einsum('bhij,bhjd->bhid', attn, v)
    out = out.transpose(0, 2, 1, 3).reshape(b, 1, inner)
    return out @ wo.T + bo


# --------------------------------------------------------------------------- main
if __name__ == "__main__":
    HEADS, DIM_HEAD, DIM, N = 4, 16, 32, 8
    INNER = HEADS * DIM_HEAD

    def make_inputs(key, b):
        ks = jax.random.split(key, 8)
        x = jax.random.normal(ks[0], (b, N, DIM), dtype=jnp.float32)
        gamma = 1.0 + 0.1 * jax.random.normal(ks[1], (DIM,), dtype=jnp.float32)
        beta = 0.1 * jax.random.normal(ks[2], (DIM,), dtype=jnp.float32)
        wk = 0.1 * jax.random.normal(ks[3], (INNER, DIM), dtype=jnp.float32)
        wv = 0.1 * jax.random.normal(ks[4], (INNER, DIM), dtype=jnp.float32)
        wq = 0.1 * jax.random.normal(ks[5], (INNER, DIM), dtype=jnp.float32)
        wo = 0.1 * jax.random.normal(ks[6], (DIM, INNER), dtype=jnp.float32)
        bo = 0.1 * jax.random.normal(ks[7], (DIM,), dtype=jnp.float32)
        return x, gamma, beta, wk, wv, wq, wo, bo

    key1, key2, key3 = jax.random.split(jax.random.PRNGKey(0), 3)
    TOL = dict(atol=2e-3, rtol=2e-3)   # approx-reciprocal softmax denominator

    # case 1: tiny batch, single grid step, auto tile sizing (whole batch in one tile)
    x, gamma, beta, wk, wv, wq, wo, bo = make_inputs(key1, 2)
    params = make_cross_attention_params(gamma, beta, wk, wv, wq, wo, bo, heads=HEADS)
    out = jax.block_until_ready(cross_attention_pallas(x, params))
    ref = cross_attention_ref(x, gamma, beta, wk, wv, wq, wo, bo, heads=HEADS)
    assert out.shape == (2, 1, DIM)
    assert jnp.allclose(out, ref, **TOL), "mismatch vs reference (case 1)"

    # case 2: multi-tile grid with an exact 8-aligned divisor (no host-side padding)
    x, gamma, beta, wk, wv, wq, wo, bo = make_inputs(key2, 24)
    params = make_cross_attention_params(gamma, beta, wk, wv, wq, wo, bo, heads=HEADS)
    out = jax.block_until_ready(cross_attention_pallas(x, params, batch_tile=8))
    ref = cross_attention_ref(x, gamma, beta, wk, wv, wq, wo, bo, heads=HEADS)
    assert out.shape == (24, 1, DIM)
    assert jnp.allclose(out, ref, **TOL), "mismatch vs reference (case 2)"

    # case 3: ragged batch exercising the padding fallback (B=20, TB=8 -> padded to 24)
    x, gamma, beta, wk, wv, wq, wo, bo = make_inputs(key3, 20)
    params = make_cross_attention_params(gamma, beta, wk, wv, wq, wo, bo, heads=HEADS)
    out = jax.block_until_ready(cross_attention_pallas(x, params, batch_tile=8))
    ref = cross_attention_ref(x, gamma, beta, wk, wv, wq, wo, bo, heads=HEADS)
    assert out.shape == (20, 1, DIM)
    assert jnp.allclose(out, ref, **TOL), "mismatch vs reference (case 3)"

    print("KERNEL_OK")
</pallas_src>

<mosaic_0001>
module attributes {stable_mosaic.version = 11 : i64} {
  func.func @_cross_attn_kernel(%arg0: i32, %arg1: memref<2x8x32xf32, #tpu.memory_space<vmem>>, %arg2: memref<1x32xf32, #tpu.memory_space<vmem>>, %arg3: memref<1x32xf32, #tpu.memory_space<vmem>>, %arg4: memref<32x128xf32, #tpu.memory_space<vmem>>, %arg5: memref<32x128xf32, #tpu.memory_space<vmem>>, %arg6: memref<128x32xf32, #tpu.memory_space<vmem>>, %arg7: memref<1x32xf32, #tpu.memory_space<vmem>>, %arg8: memref<128x4xf32, #tpu.memory_space<vmem>>, %arg9: memref<4x128xf32, #tpu.memory_space<vmem>>, %arg10: memref<2x32xf32, #tpu.memory_space<vmem>>) attributes {dimension_semantics = [#tpu.dimension_semantics<parallel>], iteration_bounds = array<i64: 1>, scalar_prefetch = 0 : i64, scratch_operands = 0 : i64, tpu.core_type = #tpu.core_type<tc>, window_params = [{transform_indices = @transform_0, window_bounds = array<i64: 2, 8, 32>}, {pipeline_mode = #tpu.pipeline_mode<synchronous>, transform_indices = @transform_1, window_bounds = array<i64: 1, 32>}, {pipeline_mode = #tpu.pipeline_mode<synchronous>, transform_indices = @transform_2, window_bounds = array<i64: 1, 32>}, {pipeline_mode = #tpu.pipeline_mode<synchronous>, transform_indices = @transform_3, window_bounds = array<i64: 32, 128>}, {pipeline_mode = #tpu.pipeline_mode<synchronous>, transform_indices = @transform_4, window_bounds = array<i64: 32, 128>}, {pipeline_mode = #tpu.pipeline_mode<synchronous>, transform_indices = @transform_5, window_bounds = array<i64: 128, 32>}, {pipeline_mode = #tpu.pipeline_mode<synchronous>, transform_indices = @transform_6, window_bounds = array<i64: 1, 32>}, {pipeline_mode = #tpu.pipeline_mode<synchronous>, transform_indices = @transform_7, window_bounds = array<i64: 128, 4>}, {pipeline_mode = #tpu.pipeline_mode<synchronous>, transform_indices = @transform_8, window_bounds = array<i64: 4, 128>}, {transform_indices = @transform_9, window_bounds = array<i64: 2, 32>}]} {
    %c0 = arith.constant 0 : index
    %c0_0 = arith.constant 0 : index
    %0 = vector.load %arg2[%c0, %c0_0] : memref<1x32xf32, #tpu.memory_space<vmem>>, vector<1x32xf32>
    %c0_1 = arith.constant 0 : index
    %c0_2 = arith.constant 0 : index
    %1 = vector.load %arg3[%c0_1, %c0_2] : memref<1x32xf32, #tpu.memory_space<vmem>>, vector<1x32xf32>
    %c0_3 = arith.constant 0 : index
    %c0_4 = arith.constant 0 : index
    %c0_5 = arith.constant 0 : index
    %2 = vector.load %arg1[%c0_3, %c0_4, %c0_5] : memref<2x8x32xf32, #tpu.memory_space<vmem>>, vector<2x8x32xf32>
    %cst = arith.constant dense<0.000000e+00> : vector<2x8xf32>
    %3 = vector.multi_reduction <add>, %2, %cst [2] : vector<2x8x32xf32> to vector<2x8xf32>
    %4 = vector.shape_cast %3 : vector<2x8xf32> to vector<2x8x1xf32>
    %cst_6 = arith.constant 3.200000e+01 : f32
    %5 = vector.broadcast %cst_6 : f32 to vector<2x8x1xf32>
    %6 = arith.divf %4, %5 : vector<2x8x1xf32>
    %7 = vector.broadcast %6 : vector<2x8x1xf32> to vector<2x8x32xf32>
    %8 = arith.subf %2, %7 : vector<2x8x32xf32>
    %9 = arith.mulf %8, %8 : vector<2x8x32xf32>
    %cst_7 = arith.constant dense<0.000000e+00> : vector<2x8xf32>
    %10 = vector.multi_reduction <add>, %9, %cst_7 [2] : vector<2x8x32xf32> to vector<2x8xf32>
    %11 = vector.shape_cast %10 : vector<2x8xf32> to vector<2x8x1xf32>
    %cst_8 = arith.constant 3.200000e+01 : f32
    %12 = vector.broadcast %cst_8 : f32 to vector<2x8x1xf32>
    %13 = arith.divf %11, %12 : vector<2x8x1xf32>
    %14 = vector.broadcast %6 : vector<2x8x1xf32> to vector<2x8x32xf32>
    %15 = arith.subf %2, %14 : vector<2x8x32xf32>
    %cst_9 = arith.constant 9.99999974E-6 : f32
    %16 = vector.broadcast %cst_9 : f32 to vector<2x8x1xf32>
    %17 = arith.addf %13, %16 : vector<2x8x1xf32>
    %18 = math.rsqrt %17 : vector<2x8x1xf32>
    %19 = vector.broadcast %18 : vector<2x8x1xf32> to vector<2x8x32xf32>
    %20 = arith.mulf %15, %19 : vector<2x8x32xf32>
    %21 = vector.shape_cast %0 : vector<1x32xf32> to vector<1x1x32xf32>
    %22 = vector.broadcast %21 : vector<1x1x32xf32> to vector<2x8x32xf32>
    %23 = arith.mulf %20, %22 : vector<2x8x32xf32>
    %24 = vector.shape_cast %1 : vector<1x32xf32> to vector<1x1x32xf32>
    %25 = vector.broadcast %24 : vector<1x1x32xf32> to vector<2x8x32xf32>
    %26 = arith.addf %23, %25 : vector<2x8x32xf32>
    %27 = vector.shape_cast %26 : vector<2x8x32xf32> to vector<16x32xf32>
    %c0_10 = arith.constant 0 : index
    %c0_11 = arith.constant 0 : index
    %28 = vector.load %arg4[%c0_10, %c0_11] : memref<32x128xf32, #tpu.memory_space<vmem>>, vector<32x128xf32>
    %cst_12 = arith.constant dense<0.000000e+00> : vector<16x128xf32>
    %29 = tpu.matmul %27, %28, %cst_12 {dimension_numbers = #tpu.dot_dimension_numbers<[1], [0], [0], [1], [0, 0, 1, 1], [], []>} : vector<16x32xf32>, vector<32x128xf32>, vector<16x128xf32> -> vector<16x128xf32>
    %30 = vector.shape_cast %29 : vector<16x128xf32> to vector<2x8x128xf32>
    %31 = vector.extract_strided_slice %26 {offsets = [0, 0, 0], sizes = [2, 1, 32], strides = [1, 1, 1]} : vector<2x8x32xf32> to vector<2x1x32xf32>
    %32 = vector.shape_cast %31 : vector<2x1x32xf32> to vector<2x32xf32>
    %c0_13 = arith.constant 0 : index
    %c0_14 = arith.constant 0 : index
    %33 = vector.load %arg5[%c0_13, %c0_14] : memref<32x128xf32, #tpu.memory_space<vmem>>, vector<32x128xf32>
    %cst_15 = arith.constant dense<0.000000e+00> : vector<2x128xf32>
    %34 = tpu.matmul %32, %33, %cst_15 {dimension_numbers = #tpu.dot_dimension_numbers<[1], [0], [0], [1], [0, 0, 1, 1], [], []>} : vector<2x32xf32>, vector<32x128xf32>, vector<2x128xf32> -> vector<2x128xf32>
    %35 = vector.shape_cast %34 : vector<2x128xf32> to vector<2x1x128xf32>
    %36 = vector.broadcast %35 : vector<2x1x128xf32> to vector<2x8x128xf32>
    %37 = arith.mulf %30, %36 : vector<2x8x128xf32>
    %38 = vector.shape_cast %37 : vector<2x8x128xf32> to vector<16x128xf32>
    %c0_16 = arith.constant 0 : index
    %c0_17 = arith.constant 0 : index
    %39 = vector.load %arg8[%c0_16, %c0_17] : memref<128x4xf32, #tpu.memory_space<vmem>>, vector<128x4xf32>
    %cst_18 = arith.constant dense<0.000000e+00> : vector<16x4xf32>
    %40 = tpu.matmul %38, %39, %cst_18 {dimension_numbers = #tpu.dot_dimension_numbers<[1], [0], [0], [1], [0, 0, 1, 1], [], []>} : vector<16x128xf32>, vector<128x4xf32>, vector<16x4xf32> -> vector<16x4xf32>
    %41 = vector.shape_cast %40 : vector<16x4xf32> to vector<2x8x4xf32>
    %cst_19 = arith.constant dense<0xFF800000> : vector<2x4xf32>
    %42 = vector.multi_reduction <maximumf>, %41, %cst_19 [1] : vector<2x8x4xf32> to vector<2x4xf32>
    %43 = vector.shape_cast %42 : vector<2x4xf32> to vector<2x1x4xf32>
    %44 = vector.broadcast %43 : vector<2x1x4xf32> to vector<2x8x4xf32>
    %45 = arith.subf %41, %44 : vector<2x8x4xf32>
    %46 = math.exp %45 : vector<2x8x4xf32>
    %cst_20 = arith.constant dense<0.000000e+00> : vector<2x4xf32>
    %47 = vector.multi_reduction <add>, %46, %cst_20 [1] : vector<2x8x4xf32> to vector<2x4xf32>
    %48 = vector.shape_cast %47 : vector<2x4xf32> to vector<2x1x4xf32>
    %49 = tpu.reciprocal %48 {approx = true} : vector<2x1x4xf32> -> vector<2x1x4xf32>
    %50 = vector.broadcast %49 : vector<2x1x4xf32> to vector<2x8x4xf32>
    %51 = arith.mulf %46, %50 : vector<2x8x4xf32>
    %52 = vector.shape_cast %51 : vector<2x8x4xf32> to vector<16x4xf32>
    %c0_21 = arith.constant 0 : index
    %c0_22 = arith.constant 0 : index
    %53 = vector.load %arg9[%c0_21, %c0_22] : memref<4x128xf32, #tpu.memory_space<vmem>>, vector<4x128xf32>
    %cst_23 = arith.constant dense<0.000000e+00> : vector<16x128xf32>
    %54 = tpu.matmul %52, %53, %cst_23 {dimension_numbers = #tpu.dot_dimension_numbers<[1], [0], [0], [1], [0, 0, 1, 1], [], []>} : vector<16x4xf32>, vector<4x128xf32>, vector<16x128xf32> -> vector<16x128xf32>
    %55 = vector.shape_cast %54 : vector<16x128xf32> to vector<2x8x128xf32>
    %56 = arith.mulf %55, %30 : vector<2x8x128xf32>
    %cst_24 = arith.constant dense<0.000000e+00> : vector<2x128xf32>
    %57 = vector.multi_reduction <add>, %56, %cst_24 [1] : vector<2x8x128xf32> to vector<2x128xf32>
    %c0_25 = arith.constant 0 : index
    %c0_26 = arith.constant 0 : index
    %58 = vector.load %arg6[%c0_25, %c0_26] : memref<128x32xf32, #tpu.memory_space<vmem>>, vector<128x32xf32>
    %cst_27 = arith.constant dense<0.000000e+00> : vector<2x32xf32>
    %59 = tpu.matmul %57, %58, %cst_27 {dimension_numbers = #tpu.dot_dimension_numbers<[1], [0], [0], [1], [0, 0, 1, 1], [], []>} : vector<2x128xf32>, vector<128x32xf32>, vector<2x32xf32> -> vector<2x32xf32>
    %c0_28 = arith.constant 0 : index
    %c0_29 = arith.constant 0 : index
    %60 = vector.load %arg7[%c0_28, %c0_29] : memref<1x32xf32, #tpu.memory_space<vmem>>, vector<1x32xf32>
    %61 = vector.broadcast %60 : vector<1x32xf32> to vector<2x32xf32>
    %62 = arith.addf %59, %61 : vector<2x32xf32>
    %c0_30 = arith.constant 0 : index
    %c0_31 = arith.constant 0 : index
    %63 = vector.load %arg10[%c0_30, %c0_31] : memref<2x32xf32, #tpu.memory_space<vmem>>, vector<2x32xf32>
    tpu.vector_store %arg10[%c0_30, %c0_31], %62 {strides = array<i32>} : memref<2x32xf32, #tpu.memory_space<vmem>>, vector<2x32xf32>,
    return
  }
  func.func @transform_0(%arg0: i32) -> (i32, i32, i32) {
    %c0_i32 = arith.constant 0 : i32
    %c0_i32_0 = arith.constant 0 : i32
    %c0_i32_1 = arith.constant 0 : i32
    return %arg0, %c0_i32, %c0_i32_0 : i32, i32, i32
  }
  func.func @transform_1(%arg0: i32) -> (i32, i32) {
    %c0_i32 = arith.constant 0 : i32
    %c0_i32_0 = arith.constant 0 : i32
    %c0_i32_1 = arith.constant 0 : i32
    return %c0_i32, %c0_i32_0 : i32, i32
  }
  func.func @transform_2(%arg0: i32) -> (i32, i32) {
    %c0_i32 = arith.constant 0 : i32
    %c0_i32_0 = arith.constant 0 : i32
    %c0_i32_1 = arith.constant 0 : i32
    return %c0_i32, %c0_i32_0 : i32, i32
  }
  func.func @transform_3(%arg0: i32) -> (i32, i32) {
    %c0_i32 = arith.constant 0 : i32
    %c0_i32_0 = arith.constant 0 : i32
    %c0_i32_1 = arith.constant 0 : i32
    return %c0_i32, %c0_i32_0 : i32, i32
  }
  func.func @transform_4(%arg0: i32) -> (i32, i32) {
    %c0_i32 = arith.constant 0 : i32
    %c0_i32_0 = arith.constant 0 : i32
    %c0_i32_1 = arith.constant 0 : i32
    return %c0_i32, %c0_i32_0 : i32, i32
  }
  func.func @transform_5(%arg0: i32) -> (i32, i32) {
    %c0_i32 = arith.constant 0 : i32
    %c0_i32_0 = arith.constant 0 : i32
    %c0_i32_1 = arith.constant 0 : i32
    return %c0_i32, %c0_i32_0 : i32, i32
  }
  func.func @transform_6(%arg0: i32) -> (i32, i32) {
    %c0_i32 = arith.constant 0 : i32
    %c0_i32_0 = arith.constant 0 : i32
    %c0_i32_1 = arith.constant 0 : i32
    return %c0_i32, %c0_i32_0 : i32, i32
  }
  func.func @transform_7(%arg0: i32) -> (i32, i32) {
    %c0_i32 = arith.constant 0 : i32
    %c0_i32_0 = arith.constant 0 : i32
    %c0_i32_1 = arith.constant 0 : i32
    return %c0_i32, %c0_i32_0 : i32, i32
  }
  func.func @transform_8(%arg0: i32) -> (i32, i32) {
    %c0_i32 = arith.constant 0 : i32
    %c0_i32_0 = arith.constant 0 : i32
    %c0_i32_1 = arith.constant 0 : i32
    return %c0_i32, %c0_i32_0 : i32, i32
  }
  func.func @transform_9(%arg0: i32) -> (i32, i32) {
    %c0_i32 = arith.constant 0 : i32
    %c0_i32_0 = arith.constant 0 : i32
    return %arg0, %c0_i32 : i32, i32
  }
}

</mosaic_0001>

<llo_original>
// kernel: tpu_custom_call.1
$region0: #{tpu_custom_call.1}
  #allocation0 [shape = 'u32[]', space=smem, size = 0x4, offset = 0x4, fixed_abs, tag = 'smem constant byte address 0x4 - core index']
  #allocation1 [shape = 'u32[72,128]{1,0:T(1,128)}', space=vmem, size = 0x9000, scoped, tag = 'internal scratch']
  %s0 = inlined_call_operand.vmem [shape: f32[2,8,32], index: 0, kind: input, shape index: {}]
  %s1 = inlined_call_operand.vmem [shape: f32[1,32], index: 1, kind: input, shape index: {}]
  %s2 = inlined_call_operand.vmem [shape: f32[1,32], index: 2, kind: input, shape index: {}]
  %s3 = inlined_call_operand.vmem [shape: f32[32,128], index: 3, kind: input, shape index: {}]
  %s4 = inlined_call_operand.vmem [shape: f32[32,128], index: 4, kind: input, shape index: {}]
  %s5 = inlined_call_operand.vmem [shape: f32[128,32], index: 5, kind: input, shape index: {}]
  %s6 = inlined_call_operand.vmem [shape: f32[1,32], index: 6, kind: input, shape index: {}]
  %s7 = inlined_call_operand.vmem [shape: f32[128,4], index: 7, kind: input, shape index: {}]
  %s8 = inlined_call_operand.vmem [shape: f32[4,128], index: 8, kind: input, shape index: {}]
  %s9 = inlined_call_operand.hbm [shape: f32[2,32], index: 9, kind: output, shape index: {}]
  %s10 = sld [smem:[#allocation0]]
  $region46: #{tpu_custom_call.1} parent=0
    _
  %s12 = ssub.s32 1, %s10
  %s13 = scalar_select 0, %s12, %s10
  $region1: #{tpu_custom_call.1} parent=0
    #allocation2 [shape = 'u8[1024]{0}', space=vmem, size = 0x400, scoped, tag = 'output window, operand 0, single buffered']
    #allocation3 [shape = 's32[1]{0}', space=sflag, size = 0x4, scoped, tag = 'scoped memory for tpu_custom_call.1']
    %14 = vsyncpa [#allocation3], 0
    // Predicated region
    $region2: #{tpu_custom_call.1} parent=1 // pred_check
      _
    $region3: #{tpu_custom_call.1} parent=1 // pred_check_branch
      %16 = sbr.rel (0) target = $region5
    $region4: #{tpu_custom_call.1} parent=1 // pred_region
      _
    $region5: #{tpu_custom_call.1} parent=1 // pred_fallthru
      _
    // Predicated region
    $region6: #{tpu_custom_call.1} parent=1 // pred_check
      _
    $region7: #{tpu_custom_call.1} parent=1 // pred_check_branch
      %18 = sbr.rel (0) target = $region9
    $region8: #{tpu_custom_call.1} parent=1 // pred_region
      _
    $region9: #{tpu_custom_call.1} parent=1 // pred_fallthru
      _
    // Predicated region
    $region10: #{tpu_custom_call.1} parent=1 // pred_check
      _
    $region11: #{tpu_custom_call.1} parent=1 // pred_check_branch
      %20 = sbr.rel (0) target = $region13
    $region12: #{tpu_custom_call.1} parent=1 // pred_region
      _
    $region13: #{tpu_custom_call.1} parent=1 // pred_fallthru
      _
    // Predicated region
    $region14: #{tpu_custom_call.1} parent=1 // pred_check
      _
    $region15: #{tpu_custom_call.1} parent=1 // pred_check_branch
      %22 = sbr.rel (0) target = $region17
    $region16: #{tpu_custom_call.1} parent=1 // pred_region
      _
    $region17: #{tpu_custom_call.1} parent=1 // pred_fallthru
      _
    // Predicated region
    $region18: #{tpu_custom_call.1} parent=1 // pred_check
      _
    $region19: #{tpu_custom_call.1} parent=1 // pred_check_branch
      %24 = sbr.rel (0) target = $region21
    $region20: #{tpu_custom_call.1} parent=1 // pred_region
      _
    $region21: #{tpu_custom_call.1} parent=1 // pred_fallthru
      _
    // Predicated region
    $region22: #{tpu_custom_call.1} parent=1 // pred_check
      _
    $region23: #{tpu_custom_call.1} parent=1 // pred_check_branch
      %26 = sbr.rel (0) target = $region25
    $region24: #{tpu_custom_call.1} parent=1 // pred_region
      _
    $region25: #{tpu_custom_call.1} parent=1 // pred_fallthru
      _
    // Predicated region
    $region26: #{tpu_custom_call.1} parent=1 // pred_check
      _
    $region27: #{tpu_custom_call.1} parent=1 // pred_check_branch
      %28 = sbr.rel (0) target = $region29
    $region28: #{tpu_custom_call.1} parent=1 // pred_region
      _
    $region29: #{tpu_custom_call.1} parent=1 // pred_fallthru
      _
    // Predicated region
    $region30: #{tpu_custom_call.1} parent=1 // pred_check
      _
    $region31: #{tpu_custom_call.1} parent=1 // pred_check_branch
      %30 = sbr.rel (0) target = $region33
    $region32: #{tpu_custom_call.1} parent=1 // pred_region
      _
    $region33: #{tpu_custom_call.1} parent=1 // pred_fallthru
      _
    // Predicated region
    $region34: #{tpu_custom_call.1} parent=1 // pred_check
      _
    $region35: #{tpu_custom_call.1} parent=1 // pred_check_branch
      %32 = sbr.rel (0) target = $region37
    $region36: #{tpu_custom_call.1} parent=1 // pred_region
      _
    $region37: #{tpu_custom_call.1} parent=1 // pred_fallthru
      _
    %v33 = vld [vmem:[%s1] sm:$0x1]
    %v34 = vld [vmem:[%s2] sm:$0x1]
    %v35 = vld [vmem:[%s0] sm:$0xff]
    %v36 = vld [vmem:[%s0 + $0x8] sm:$0xff]
    %vm37 = vcmask 261120
    %v38 = vsel %vm37, %v35, 0.0
    %39 = vadd.xlane.f32.xlu0 %v38
    %v40 = vpop.xlane.xlu0 %39
    %v41 = vsel %vm37, %v36, 0.0
    %42 = vadd.xlane.f32.xlu0 %v41
    %v43 = vpop.xlane.xlu0 %42
    %v44 = vrcp.pop 32.0
    %v45 = vmul.f32 32.0, %v44
    %v46 = vsub.f32 1.0, %v45
    %v47 = vmul.f32 %v44, %v46
    %v48 = vadd.f32 %v44, %v47
    %vm49 = vweird.f32 %v44
    %v50 = vsel %vm49, %v44, %v48
    %v51 = vmul.f32 %v40, %v50
    %v52 = vmul.f32 %v43, %v50
    %v53 = vsub.f32 %v35, %v51
    %v54 = vsub.f32 %v36, %v52
    %v55 = vmul.f32 %v53, %v53
    %v56 = vmul.f32 %v54, %v54
    %v57 = vsel %vm37, %v55, 0.0
    %58 = vadd.xlane.f32.xlu0 %v57
    %v59 = vpop.xlane.xlu0 %58
    %v60 = vsel %vm37, %v56, 0.0
    %61 = vadd.xlane.f32.xlu0 %v60
    %v62 = vpop.xlane.xlu0 %61
    %v63 = vmul.f32 %v59, %v50
    %v64 = vmul.f32 %v62, %v50
    %v65 = vadd.f32 %v63, 1e-05
    %v66 = vadd.f32 %v64, 1e-05
    %v67 = vrsqrt.pop %v65
    %v68 = vmul.f32 %v67, %v65
    %v69 = vmul.f32 %v68, %v67
    %v70 = vmul.f32 0.5, %v69
    %v71 = vsub.f32 1.5, %v70
    %v72 = vmul.f32 %v67, %v71
    %vm73 = vweird.f32 %v65
    %vm74 = vweird.f32 %v67
    %vm75 = vmor %vm73, %vm74
    %v76 = vsel %vm75, %v67, %v72
    %v77 = vrsqrt.pop %v66
    %v78 = vmul.f32 %v77, %v66
    %v79 = vmul.f32 %v78, %v77
    %v80 = vmul.f32 0.5, %v79
    %v81 = vsub.f32 1.5, %v80
    %v82 = vmul.f32 %v77, %v81
    %vm83 = vweird.f32 %v66
    %vm84 = vweird.f32 %v77
    %vm85 = vmor %vm83, %vm84
    %v86 = vsel %vm85, %v77, %v82
    %v87 = vmul.f32 %v53, %v76
    %v88 = vmul.f32 %v54, %v86
    %v90 = vperm.slane %v33, 0
    %v92 = vmul.f32 %v87, %v90
    %v93 = vmul.f32 %v88, %v90
    %v95 = vperm.slane %v34, 0
    %v97 = vadd.f32 %v92, %v95
    %v98 = vadd.f32 %v93, %v95
    %v99 = vld [vmem:[%s3] sm:$0xff]
    %v100 = vld [vmem:[%s3 + $0x8] sm:$0xff]
    %v101 = vld [vmem:[%s3 + $0x10] sm:$0xff]
    %v102 = vld [vmem:[%s3 + $0x18] sm:$0xff]
    %v104 = vsel %vm37, %v97, 0
    %v107 = vsel %vm37, %v98, 0
    %109 = vmatpush.msra.mxu0 0.0
    %110 = vmatpush.msra.mxu0 0.0
    %111 = vmatpush.msra.mxu0 0.0
    %112 = vmatpush.msra.mxu0 0.0
    %113 = vmatpush.msra.mxu0 0.0
    %114 = vmatpush.msra.mxu0 0.0
    %115 = vmatpush.msra.mxu0 0.0
    %116 = vmatpush.msra.mxu0 0.0
    %117 = vmatpush.msra.mxu0 0.0
    %118 = vmatpush.msra.mxu0 0.0
    %119 = vmatpush.msra.mxu0 0.0
    %120 = vmatpush.msra.mxu0 0.0
    %121 = vmatpush.msra.mxu0 %v102
    %122 = vmatpush.msra.mxu0 %v101
    %123 = vmatpush.msra.mxu0 %v100
    %124 = vmatpush.msra.mxu0 %v99
    %125 = vmatmul.f32.gmra.mxu0 %v104
    %v126 = vpop.f32.mrf.mxu0
    %v127 = vadd.f32 0.0, %v126
    %128 = vmatmul.f32.gmra.mxu0 %v107
    %v129 = vpop.f32.mrf.mxu0
    %v130 = vadd.f32 0.0, %v129
    %131 = vdwg.mxu0
    %v132 = vld [vmem:[%s4] sm:$0xff]
    %v133 = vld [vmem:[%s4 + $0x8] sm:$0xff]
    %v134 = vld [vmem:[%s4 + $0x10] sm:$0xff]
    %v135 = vld [vmem:[%s4 + $0x18] sm:$0xff]
    %v136 = vrot.slane %v98, 7
    %vm137 = vcmask 1041409
    %v138 = vsel %vm137, %v136, %v97
    %v139 = vsel %vm37, %v138, 0
    %141 = vmatpush.msra.mxu0 0.0
    %142 = vmatpush.msra.mxu0 0.0
    %143 = vmatpush.msra.mxu0 0.0
    %144 = vmatpush.msra.mxu0 0.0
    %145 = vmatpush.msra.mxu0 0.0
    %146 = vmatpush.msra.mxu0 0.0
    %147 = vmatpush.msra.mxu0 0.0
    %148 = vmatpush.msra.mxu0 0.0
    %149 = vmatpush.msra.mxu0 0.0
    %150 = vmatpush.msra.mxu0 0.0
    %151 = vmatpush.msra.mxu0 0.0
    %152 = vmatpush.msra.mxu0 0.0
    %153 = vmatpush.msra.mxu0 %v135
    %154 = vmatpush.msra.mxu0 %v134
    %155 = vmatpush.msra.mxu0 %v133
    %156 = vmatpush.msra.mxu0 %v132
    %157 = vmatmul.f32.gmra.mxu0 %v139
    %v158 = vpop.f32.mrf.mxu0
    %v159 = vadd.f32 0.0, %v158
    %160 = vdwg.mxu0
    %v162 = vrot.slane %v159, 1
    %v163 = vperm.slane %v159, 0
    %v164 = vperm.slane %v162, 0
    %v167 = vmul.f32 %v127, %v163
    %v168 = vmul.f32 %v130, %v164
    %v169 = vld [vmem:[%s7] sm:$0xff]
    %v170 = vld [vmem:[%s7 + $0x8] sm:$0xff]
    %v171 = vld [vmem:[%s7 + $0x10] sm:$0xff]
    %v172 = vld [vmem:[%s7 + $0x18] sm:$0xff]
    %v173 = vld [vmem:[%s7 + $0x20] sm:$0xff]
    %v174 = vld [vmem:[%s7 + $0x28] sm:$0xff]
    %v175 = vld [vmem:[%s7 + $0x30] sm:$0xff]
    %v176 = vld [vmem:[%s7 + $0x38] sm:$0xff]
    %v177 = vld [vmem:[%s7 + $0x40] sm:$0xff]
    %v178 = vld [vmem:[%s7 + $0x48] sm:$0xff]
    %v179 = vld [vmem:[%s7 + $0x50] sm:$0xff]
    %v180 = vld [vmem:[%s7 + $0x58] sm:$0xff]
    %v181 = vld [vmem:[%s7 + $0x60] sm:$0xff]
    %v182 = vld [vmem:[%s7 + $0x68] sm:$0xff]
    %v183 = vld [vmem:[%s7 + $0x70] sm:$0xff]
    %v184 = vld [vmem:[%s7 + $0x78] sm:$0xff]
    %185 = vmatpush.msra.mxu0 %v184
    %186 = vmatpush.msra.mxu0 %v183
    %187 = vmatpush.msra.mxu0 %v182
    %188 = vmatpush.msra.mxu0 %v181
    %189 = vmatpush.msra.mxu0 %v180
    %190 = vmatpush.msra.mxu0 %v179
    %191 = vmatpush.msra.mxu0 %v178
    %192 = vmatpush.msra.mxu0 %v177
    %193 = vmatpush.msra.mxu0 %v176
    %194 = vmatpush.msra.mxu0 %v175
    %195 = vmatpush.msra.mxu0 %v174
    %196 = vmatpush.msra.mxu0 %v173
    %197 = vmatpush.msra.mxu0 %v172
    %198 = vmatpush.msra.mxu0 %v171
    %199 = vmatpush.msra.mxu0 %v170
    %200 = vmatpush.msra.mxu0 %v169
    %201 = vmatmul.f32.gmra.mxu0 %v167
    %v202 = vpop.f32.mrf.mxu0
    %v203 = vadd.f32 0.0, %v202
    %204 = vmatmul.f32.gmra.mxu0 %v168
    %v205 = vpop.f32.mrf.mxu0
    %v206 = vadd.f32 0.0, %v205
    %207 = vdwg.mxu0
    %vm208 = vcmask 31744
    %v209 = vsel %vm208, %v203, -inf
    %v210 = vrot.slane %v209, 4
    %v211 = vmax.f32 %v209, %v210
    %v212 = vrot.slane %v211, 2
    %v213 = vmax.f32 %v211, %v212
    %v214 = vrot.slane %v213, 1
    %v215 = vmax.f32 %v213, %v214
    %v216 = vsel %vm208, %v206, -inf
    %v217 = vrot.slane %v216, 4
    %v218 = vmax.f32 %v216, %v217
    %v219 = vrot.slane %v218, 2
    %v220 = vmax.f32 %v218, %v219
    %v221 = vrot.slane %v220, 1
    %v222 = vmax.f32 %v220, %v221
    %v223 = vsub.f32 %v203, %v215
    %v224 = vsub.f32 %v206, %v222
    %v225 = vmul.f32 %v223, 1.442695
    %v226 = vpow.pop %v225
    %v227 = vmul.f32 %v224, 1.442695
    %v228 = vpow.pop %v227
    %v229 = vsel %vm208, %v226, 0.0
    %v230 = vrot.slane %v229, 4
    %v231 = vadd.f32 %v229, %v230
    %v232 = vrot.slane %v231, 2
    %v233 = vadd.f32 %v231, %v232
    %v234 = vrot.slane %v233, 1
    %v235 = vadd.f32 %v233, %v234
    %v236 = vsel %vm208, %v228, 0.0
    %v237 = vrot.slane %v236, 4
    %v238 = vadd.f32 %v236, %v237
    %v239 = vrot.slane %v238, 2
    %v240 = vadd.f32 %v238, %v239
    %v241 = vrot.slane %v240, 1
    %v242 = vadd.f32 %v240, %v241
    %v243 = vrcp.pop %v235
    %v244 = vrcp.pop %v242
    %v245 = vmul.f32 %v226, %v243
    %v246 = vmul.f32 %v228, %v244
    %v247 = vld [vmem:[%s8] sm:$0xf]
    %v249 = vsel %vm208, %v245, 0
    %v252 = vsel %vm208, %v246, 0
    %vm254 = vcmask 1043456
    %v256 = vsel %vm254, %v247, 0
    %258 = vmatpush.msra.mxu0 0.0
    %259 = vmatpush.msra.mxu0 0.0
    %260 = vmatpush.msra.mxu0 0.0
    %261 = vmatpush.msra.mxu0 0.0
    %262 = vmatpush.msra.mxu0 0.0
    %263 = vmatpush.msra.mxu0 0.0
    %264 = vmatpush.msra.mxu0 0.0
    %265 = vmatpush.msra.mxu0 0.0
    %266 = vmatpush.msra.mxu0 0.0
    %267 = vmatpush.msra.mxu0 0.0
    %268 = vmatpush.msra.mxu0 0.0
    %269 = vmatpush.msra.mxu0 0.0
    %270 = vmatpush.msra.mxu0 0.0
    %271 = vmatpush.msra.mxu0 0.0
    %272 = vmatpush.msra.mxu0 0.0
    %273 = vmatpush.msra.mxu0 %v256
    %274 = vmatmul.f32.gmra.mxu0 %v249
    %v275 = vpop.f32.mrf.mxu0
    %v276 = vadd.f32 0.0, %v275
    %277 = vmatmul.f32.gmra.mxu0 %v252
    %v278 = vpop.f32.mrf.mxu0
    %v279 = vadd.f32 0.0, %v278
    %280 = vdwg.mxu0
    %v281 = vmul.f32 %v276, %v127
    %v282 = vmul.f32 %v279, %v130
    %v283 = vrot.slane %v281, 4
    %v284 = vadd.f32 %v281, %v283
    %v285 = vrot.slane %v284, 2
    %v286 = vadd.f32 %v284, %v285
    %v287 = vrot.slane %v286, 1
    %v288 = vadd.f32 %v286, %v287
    %v289 = vrot.slane %v282, 4
    %v290 = vadd.f32 %v282, %v289
    %v291 = vrot.slane %v290, 2
    %v292 = vadd.f32 %v290, %v291
    %v293 = vrot.slane %v292, 1
    %v294 = vadd.f32 %v292, %v293
    %v295 = vld [vmem:[%s5] sm:$0xff]
    %v296 = vld [vmem:[%s5 + $0x8] sm:$0xff]
    %v297 = vld [vmem:[%s5 + $0x10] sm:$0xff]
    %v298 = vld [vmem:[%s5 + $0x18] sm:$0xff]
    %v299 = vld [vmem:[%s5 + $0x20] sm:$0xff]
    %v300 = vld [vmem:[%s5 + $0x28] sm:$0xff]
    %v301 = vld [vmem:[%s5 + $0x30] sm:$0xff]
    %v302 = vld [vmem:[%s5 + $0x38] sm:$0xff]
    %v303 = vld [vmem:[%s5 + $0x40] sm:$0xff]
    %v304 = vld [vmem:[%s5 + $0x48] sm:$0xff]
    %v305 = vld [vmem:[%s5 + $0x50] sm:$0xff]
    %v306 = vld [vmem:[%s5 + $0x58] sm:$0xff]
    %v307 = vld [vmem:[%s5 + $0x60] sm:$0xff]
    %v308 = vld [vmem:[%s5 + $0x68] sm:$0xff]
    %v309 = vld [vmem:[%s5 + $0x70] sm:$0xff]
    %v310 = vld [vmem:[%s5 + $0x78] sm:$0xff]
    %v311 = vld [vmem:[%s6] sm:$0x1]
    %v313 = vperm.slane %v311, 0
    %v317 = vsel %vm137, %v294, %v288
    %319 = vmatpush.msra.mxu0 %v310
    %320 = vmatpush.msra.mxu0 %v309
    %321 = vmatpush.msra.mxu0 %v308
    %322 = vmatpush.msra.mxu0 %v307
    %323 = vmatpush.msra.mxu0 %v306
    %324 = vmatpush.msra.mxu0 %v305
    %325 = vmatpush.msra.mxu0 %v304
    %326 = vmatpush.msra.mxu0 %v303
    %327 = vmatpush.msra.mxu0 %v302
    %328 = vmatpush.msra.mxu0 %v301
    %329 = vmatpush.msra.mxu0 %v300
    %330 = vmatpush.msra.mxu0 %v299
    %331 = vmatpush.msra.mxu0 %v298
    %332 = vmatpush.msra.mxu0 %v297
    %333 = vmatpush.msra.mxu0 %v296
    %334 = vmatpush.msra.mxu0 %v295
    %335 = vmatmul.f32.gmra.mxu0 %v317
    %v336 = vpop.f32.mrf.mxu0
    %v337 = vadd.f32 %v313, %v336
    %338 = vdwg.mxu0
    %vm339 = vcmask 254976
    %340 = vst.msk [vmem:[#allocation2] sm:$0x3] %vm339, %v337
    // Predicated region
    $region38: #{tpu_custom_call.1} parent=1 // pred_check
      _
    $region39: #{tpu_custom_call.1} parent=1 // pred_check_branch
      %342 = sbr.rel (0) target = $region41
    $region40: #{tpu_custom_call.1} parent=1 // pred_region
      %344 = vsyncadd [#allocation3], 0
      %s346 = sshll.u32 [#allocation2], 4
      %s347 = int_to_ptr.vmem [resolvable:$true] %s346
      %s348 = sshll.u32 %s9, 4
      %s349 = int_to_ptr.hbm [resolvable:$true] %s348
      %351 = dma.vmem_to_hbm [thread:$0]  %s347, 32, %s349, [#allocation3]
    $region41: #{tpu_custom_call.1} parent=1 // pred_fallthru
      _
    // Predicated region
    $region42: #{tpu_custom_call.1} parent=1 // pred_check
      _
    $region43: #{tpu_custom_call.1} parent=1 // pred_check_branch
      %353 = sbr.rel (0) target = $region45
    $region44: #{tpu_custom_call.1} parent=1 // pred_region
      %355 = dma.done [#allocation3], 32
    $region45: #{tpu_custom_call.1} parent=1 // pred_fallthru
      _
    %356 = vsyncpa [#allocation3], 1

</llo_original>
